<compile_context>
chip_gen: v7x
topology: tpu7x:2x2x1
jax: 0.10.0
libtpu: 0.0.40
codegen_flags: <defaults>
</compile_context>

<pallas_src>
import functools

import jax
import jax.numpy as jnp
from jax import lax
from jax.experimental import pallas as pl
from jax.experimental.pallas import tpu as pltpu

_LANE = 128
_SUBLANE = 8
# 4096 rows * 128 lanes * 4 B = 2 MiB per input per pipeline buffer.
_MAX_BLOCK_ROWS = 4096


def _round_up(x: int, m: int) -> int:
    return ((x + m - 1) // m) * m


def _l1g_reduce_kernel(p_ref, t_ref, abs_out_ref, sq_out_ref, *,
                       total_rows, block_rows, steps_per_core, needs_mask):
    """Accumulate per-core vreg-shaped partials of sum(|p-t|) and sum(p*p)."""
    c = pl.program_id(0)   # core / partial index ("parallel")
    i = pl.program_id(1)   # reduction step      ("arbitrary")

    @pl.when(i == 0)
    def _init():
        abs_out_ref[...] = jnp.zeros_like(abs_out_ref)
        sq_out_ref[...] = jnp.zeros_like(sq_out_ref)

    p = p_ref[...].astype(jnp.float32)
    t = t_ref[...].astype(jnp.float32)

    abs_d = jnp.abs(p - t)
    sq = p * p

    if needs_mask:
        # Logical (unclamped) block index of this step; rows past `total_rows`
        # (partial last block, or clamped duplicate blocks) contribute zero.
        gb = c * steps_per_core + i
        row = gb * block_rows + lax.broadcasted_iota(
            jnp.int32, (block_rows, 1), 0)
        valid = row < total_rows
        abs_d = jnp.where(valid, abs_d, 0.0)
        sq = jnp.where(valid, sq, 0.0)

    # Fold the block into a vreg-shaped (8, 128) partial: pure VALU adds,
    # no per-step cross-lane (XLU) reduction and no scalar dependency chain.
    abs_out_ref[...] += jnp.sum(
        abs_d.reshape(block_rows // _SUBLANE, _SUBLANE, _LANE), axis=0)
    sq_out_ref[...] += jnp.sum(
        sq.reshape(block_rows // _SUBLANE, _SUBLANE, _LANE), axis=0)


def _reduce_sums(pred: jax.Array, target: jax.Array):
    """Returns (sum |pred - target|, sum pred**2) as f32 scalars via Pallas."""
    n_elem = pred.size
    flat_p = pred.reshape(-1)
    flat_t = target.reshape(-1)

    # Only pad when the element count is not lane aligned (rare for dense
    # losses); zero padding is exact (|0-0| = 0 and 0**2 = 0 contribute nothing).
    # TODO(synk): a fully pad-free path for n % 128 != 0 would need an
    #             element-granular mask on an unaligned layout; not done here.
    padded = max(_round_up(n_elem, _LANE), _SUBLANE * _LANE)
    if padded != n_elem:
        flat_p = jnp.pad(flat_p, (0, padded - n_elem))
        flat_t = jnp.pad(flat_t, (0, padded - n_elem))

    rows = padded // _LANE
    p2 = flat_p.reshape(rows, _LANE)
    t2 = flat_t.reshape(rows, _LANE)

    # Biggest block that fits comfortably; tiny inputs collapse to one step.
    block_rows = min(_MAX_BLOCK_ROWS, _round_up(rows, _SUBLANE))
    total_blocks = pl.cdiv(rows, block_rows)

    # Split the reduction across the two v7x TensorCores when there is enough
    # work; a single partial otherwise. Harmless on single-TC v5e/v6e.
    num_cores = 2 if total_blocks >= 2 else 1
    steps_per_core = pl.cdiv(total_blocks, num_cores)
    needs_mask = (num_cores * steps_per_core * block_rows) != rows

    def in_map(c, i):
        # Clamp so every DMA targets a valid block; logically-out-of-range
        # steps are fully masked inside the kernel.
        blk = jnp.minimum(c * steps_per_core + i, total_blocks - 1)
        return (blk, 0)

    kernel = functools.partial(
        _l1g_reduce_kernel,
        total_rows=rows,
        block_rows=block_rows,
        steps_per_core=steps_per_core,
        needs_mask=needs_mask,
    )

    abs_part, sq_part = pl.pallas_call(
        kernel,
        out_shape=(
            jax.ShapeDtypeStruct((num_cores, _SUBLANE, _LANE), jnp.float32),
            jax.ShapeDtypeStruct((num_cores, _SUBLANE, _LANE), jnp.float32),
        ),
        grid_spec=pltpu.PrefetchScalarGridSpec(
            num_scalar_prefetch=0,
            grid=(num_cores, steps_per_core),
            in_specs=[
                pl.BlockSpec((block_rows, _LANE), in_map),
                pl.BlockSpec((block_rows, _LANE), in_map),
            ],
            out_specs=[
                pl.BlockSpec((None, _SUBLANE, _LANE), lambda c, i: (c, 0, 0)),
                pl.BlockSpec((None, _SUBLANE, _LANE), lambda c, i: (c, 0, 0)),
            ],
        ),
        compiler_params=pltpu.CompilerParams(
            dimension_semantics=("parallel", "arbitrary"),
        ),
        cost_estimate=pl.CostEstimate(
            flops=5 * n_elem, transcendentals=0, bytes_accessed=8 * n_elem),
    )(p2, t2)

    # Single final cross-lane reduction on tiny (cores, 8, 128) partials.
    return jnp.sum(abs_part), jnp.sum(sq_part)


@functools.partial(
    jax.jit,
    static_argnames=("reduction", "loss_weight", "penalty_weight", "avg_factor"),
)
def l1g_loss(
    pred: jax.Array,
    target: jax.Array,
    *,
    reduction: str = "mean",
    loss_weight: float = 1.0,
    penalty_weight: float = 1.0,
    avg_factor=None,  # must be a Python number (static), as in mmdet usage
):
    assert reduction in ("mean", "sum"), "only scalar reductions supported here"
    n_elem = pred.size

    abs_sum, sq_sum = _reduce_sums(pred, target)

    if avg_factor is None:
        if reduction == "mean":
            l1 = abs_sum / jnp.float32(n_elem)
        else:  # "sum"
            l1 = abs_sum
    else:
        # mmdet weight_reduce_loss: avg_factor only valid with reduction == 'mean'
        assert reduction == "mean"
        l1 = abs_sum / jnp.float32(avg_factor)

    loss_bbox = jnp.float32(loss_weight) * l1
    reg_penalty = jnp.float32(penalty_weight) * (sq_sum / jnp.float32(n_elem))

    diff = loss_bbox - reg_penalty
    return jnp.where(diff <= 0, loss_bbox, diff)


def _reference(pred, target, reduction="mean", loss_weight=1.0, penalty_weight=1.0):
    """Pure-JAX reference mirroring the PyTorch forward (weight=None)."""
    l1 = jnp.abs(pred.astype(jnp.float32) - target.astype(jnp.float32))
    l1 = l1.mean() if reduction == "mean" else l1.sum()
    loss_bbox = loss_weight * l1
    reg_penalty = penalty_weight * (pred.astype(jnp.float32) ** 2).mean()
    diff = loss_bbox - reg_penalty
    return jnp.where(diff <= 0, loss_bbox, diff)


if __name__ == "__main__":
    key = jax.random.PRNGKey(0)
    k1, k2, k3, k4 = jax.random.split(key, 4)

    # Primary demo: NCHW-equivalent shape (2, 4, 16, 16); elementwise loss so
    # the wrapper flattens to a (rows, 128)-lane layout (single grid step here).
    shape = (2, 4, 16, 16)
    pred = jax.random.normal(k1, shape, dtype=jnp.float32)
    target = jax.random.normal(k2, shape, dtype=jnp.float32)

    out = l1g_loss(pred, target, reduction="mean",
                   loss_weight=1.0, penalty_weight=1.0)
    out = jax.block_until_ready(out)
    ref = _reference(pred, target)
    assert jnp.allclose(out, ref, rtol=1e-5, atol=1e-5), (out, ref)

    # Secondary check exercising multi-block / two-partial / masked-tail path:
    # (2, 4, 384, 384) -> 1,179,648 elems -> 9216 rows -> 3 blocks of 4096 rows,
    # split over two partials with a clamped+masked logical step.
    shape2 = (2, 4, 384, 384)
    pred2 = jax.random.normal(k3, shape2, dtype=jnp.float32)
    target2 = jax.random.normal(k4, shape2, dtype=jnp.float32)

    out2 = l1g_loss(pred2, target2, reduction="sum",
                    loss_weight=0.5, penalty_weight=2.0)
    out2 = jax.block_until_ready(out2)
    ref2 = _reference(pred2, target2, reduction="sum",
                      loss_weight=0.5, penalty_weight=2.0)
    # Loose tolerance: f32 accumulation order differs between the Pallas
    # partial-sum scheme and XLA's reduction on ~1.2M elements.
    assert jnp.allclose(out2, ref2, rtol=1e-3), (out2, ref2)

    # Mean-reduction check on the same large input (value ~O(1)).
    out3 = l1g_loss(pred2, target2, reduction="mean",
                    loss_weight=1.0, penalty_weight=0.25)
    out3 = jax.block_until_ready(out3)
    ref3 = _reference(pred2, target2, reduction="mean",
                      loss_weight=1.0, penalty_weight=0.25)
    assert jnp.allclose(out3, ref3, rtol=1e-4, atol=1e-5), (out3, ref3)

    print("KERNEL_OK")
</pallas_src>

<mosaic_0001>
module attributes {stable_mosaic.version = 11 : i64} {
  func.func @_l1g_reduce_kernel(%arg0: i32, %arg1: i32, %arg2: memref<16x128xf32, #tpu.memory_space<vmem>>, %arg3: memref<16x128xf32, #tpu.memory_space<vmem>>, %arg4: memref<1x8x128xf32, #tpu.memory_space<vmem>>, %arg5: memref<1x8x128xf32, #tpu.memory_space<vmem>>) attributes {dimension_semantics = [#tpu.dimension_semantics<parallel>, #tpu.dimension_semantics<arbitrary>], iteration_bounds = array<i64: 1, 1>, scalar_prefetch = 0 : i64, scratch_operands = 0 : i64, tpu.core_type = #tpu.core_type<tc>, window_params = [{transform_indices = @transform_0, window_bounds = array<i64: 16, 128>}, {transform_indices = @transform_1, window_bounds = array<i64: 16, 128>}, {transform_indices = @transform_2, window_bounds = array<i64: 1, 8, 128>}, {transform_indices = @transform_3, window_bounds = array<i64: 1, 8, 128>}]} {
    %c0_i32 = arith.constant 0 : i32
    %0 = arith.cmpi eq, %arg1, %c0_i32 : i32
    %1 = arith.extui %0 : i1 to i32
    %c0_i32_0 = arith.constant 0 : i32
    %2 = arith.cmpi ne, %1, %c0_i32_0 : i32
    scf.if %2 {
      %cst_17 = arith.constant 0.000000e+00 : f32
      %24 = vector.broadcast %cst_17 : f32 to vector<8x128xf32>
      %c0_18 = arith.constant 0 : index
      %c0_19 = arith.constant 0 : index
      %c0_20 = arith.constant 0 : index
      %25 = vector.load %arg4[%c0_18, %c0_19, %c0_20] : memref<1x8x128xf32, #tpu.memory_space<vmem>>, vector<1x8x128xf32>
      %26 = vector.shape_cast %25 : vector<1x8x128xf32> to vector<8x128xf32>
      %27 = vector.shape_cast %24 : vector<8x128xf32> to vector<1x8x128xf32>
      tpu.vector_store %arg4[%c0_18, %c0_19, %c0_20], %27 {strides = array<i32>} : memref<1x8x128xf32, #tpu.memory_space<vmem>>, vector<1x8x128xf32>,
      %cst_21 = arith.constant 0.000000e+00 : f32
      %28 = vector.broadcast %cst_21 : f32 to vector<8x128xf32>
      %c0_22 = arith.constant 0 : index
      %c0_23 = arith.constant 0 : index
      %c0_24 = arith.constant 0 : index
      %29 = vector.load %arg5[%c0_22, %c0_23, %c0_24] : memref<1x8x128xf32, #tpu.memory_space<vmem>>, vector<1x8x128xf32>
      %30 = vector.shape_cast %29 : vector<1x8x128xf32> to vector<8x128xf32>
      %31 = vector.shape_cast %28 : vector<8x128xf32> to vector<1x8x128xf32>
      tpu.vector_store %arg5[%c0_22, %c0_23, %c0_24], %31 {strides = array<i32>} : memref<1x8x128xf32, #tpu.memory_space<vmem>>, vector<1x8x128xf32>,
    } else {
    }
    %c0 = arith.constant 0 : index
    %c0_1 = arith.constant 0 : index
    %3 = vector.load %arg2[%c0, %c0_1] : memref<16x128xf32, #tpu.memory_space<vmem>>, vector<16x128xf32>
    %c0_2 = arith.constant 0 : index
    %c0_3 = arith.constant 0 : index
    %4 = vector.load %arg3[%c0_2, %c0_3] : memref<16x128xf32, #tpu.memory_space<vmem>>, vector<16x128xf32>
    %5 = arith.subf %3, %4 : vector<16x128xf32>
    %6 = math.absf %5 : vector<16x128xf32>
    %7 = arith.mulf %3, %3 : vector<16x128xf32>
    %c0_4 = arith.constant 0 : index
    %c0_5 = arith.constant 0 : index
    %c0_6 = arith.constant 0 : index
    %8 = vector.load %arg4[%c0_4, %c0_5, %c0_6] : memref<1x8x128xf32, #tpu.memory_space<vmem>>, vector<1x8x128xf32>
    %9 = vector.shape_cast %8 : vector<1x8x128xf32> to vector<8x128xf32>
    %10 = vector.shape_cast %6 : vector<16x128xf32> to vector<2x8x128xf32>
    %cst = arith.constant dense<0.000000e+00> : vector<8x128xf32>
    %11 = vector.multi_reduction <add>, %10, %cst [0] : vector<2x8x128xf32> to vector<8x128xf32>
    %12 = arith.addf %9, %11 : vector<8x128xf32>
    %c0_7 = arith.constant 0 : index
    %c0_8 = arith.constant 0 : index
    %c0_9 = arith.constant 0 : index
    %13 = vector.load %arg4[%c0_7, %c0_8, %c0_9] : memref<1x8x128xf32, #tpu.memory_space<vmem>>, vector<1x8x128xf32>
    %14 = vector.shape_cast %13 : vector<1x8x128xf32> to vector<8x128xf32>
    %15 = vector.shape_cast %12 : vector<8x128xf32> to vector<1x8x128xf32>
    tpu.vector_store %arg4[%c0_7, %c0_8, %c0_9], %15 {strides = array<i32>} : memref<1x8x128xf32, #tpu.memory_space<vmem>>, vector<1x8x128xf32>,
    %c0_10 = arith.constant 0 : index
    %c0_11 = arith.constant 0 : index
    %c0_12 = arith.constant 0 : index
    %16 = vector.load %arg5[%c0_10, %c0_11, %c0_12] : memref<1x8x128xf32, #tpu.memory_space<vmem>>, vector<1x8x128xf32>
    %17 = vector.shape_cast %16 : vector<1x8x128xf32> to vector<8x128xf32>
    %18 = vector.shape_cast %7 : vector<16x128xf32> to vector<2x8x128xf32>
    %cst_13 = arith.constant dense<0.000000e+00> : vector<8x128xf32>
    %19 = vector.multi_reduction <add>, %18, %cst_13 [0] : vector<2x8x128xf32> to vector<8x128xf32>
    %20 = arith.addf %17, %19 : vector<8x128xf32>
    %c0_14 = arith.constant 0 : index
    %c0_15 = arith.constant 0 : index
    %c0_16 = arith.constant 0 : index
    %21 = vector.load %arg5[%c0_14, %c0_15, %c0_16] : memref<1x8x128xf32, #tpu.memory_space<vmem>>, vector<1x8x128xf32>
    %22 = vector.shape_cast %21 : vector<1x8x128xf32> to vector<8x128xf32>
    %23 = vector.shape_cast %20 : vector<8x128xf32> to vector<1x8x128xf32>
    tpu.vector_store %arg5[%c0_14, %c0_15, %c0_16], %23 {strides = array<i32>} : memref<1x8x128xf32, #tpu.memory_space<vmem>>, vector<1x8x128xf32>,
    return
  }
  func.func @transform_0(%arg0: i32, %arg1: i32) -> (i32, i32) {
    %c1_i32 = arith.constant 1 : i32
    %0 = arith.muli %arg0, %c1_i32 : i32
    %1 = arith.addi %0, %arg1 : i32
    %c0_i32 = arith.constant 0 : i32
    %2 = arith.minsi %1, %c0_i32 : i32
    %c0_i32_0 = arith.constant 0 : i32
    %c0_i32_1 = arith.constant 0 : i32
    return %2, %c0_i32_0 : i32, i32
  }
  func.func @transform_1(%arg0: i32, %arg1: i32) -> (i32, i32) {
    %c1_i32 = arith.constant 1 : i32
    %0 = arith.muli %arg0, %c1_i32 : i32
    %1 = arith.addi %0, %arg1 : i32
    %c0_i32 = arith.constant 0 : i32
    %2 = arith.minsi %1, %c0_i32 : i32
    %c0_i32_0 = arith.constant 0 : i32
    %c0_i32_1 = arith.constant 0 : i32
    return %2, %c0_i32_0 : i32, i32
  }
  func.func @transform_2(%arg0: i32, %arg1: i32) -> (i32, i32, i32) {
    %c0_i32 = arith.constant 0 : i32
    %c0_i32_0 = arith.constant 0 : i32
    %c0_i32_1 = arith.constant 0 : i32
    return %arg0, %c0_i32, %c0_i32_0 : i32, i32, i32
  }
  func.func @transform_3(%arg0: i32, %arg1: i32) -> (i32, i32, i32) {
    %c0_i32 = arith.constant 0 : i32
    %c0_i32_0 = arith.constant 0 : i32
    %c0_i32_1 = arith.constant 0 : i32
    return %arg0, %c0_i32, %c0_i32_0 : i32, i32, i32
  }
}

</mosaic_0001>

<llo_original>
// kernel: l1g_loss.1
$region0: #{l1g_loss.1}
  #allocation0 [shape = 'u32[]', space=smem, size = 0x4, offset = 0x4, fixed_abs, tag = 'smem constant byte address 0x4 - core index']
  #allocation1 [shape = 'u32[144,128]{1,0:T(1,128)}', space=vmem, size = 0x12000, scoped, tag = 'internal scratch']
  %s0 = inlined_call_operand.vmem [shape: f32[16,128], index: 0, kind: input, shape index: {}]
  %s1 = inlined_call_operand.vmem [shape: f32[16,128], index: 1, kind: input, shape index: {}]
  %s2 = inlined_call_operand.vmem [shape: f32[1,8,128], index: 2, kind: output, shape index: {0}]
  %s3 = inlined_call_operand.vmem [shape: f32[1,8,128], index: 3, kind: output, shape index: {1}]
  %4 = xla_tuple %s2, %s3
  %s5 = sld [smem:[#allocation0]]
  $region30: #{l1g_loss.1} parent=0
    _
  %s7 = ssub.s32 1, %s5
  %s8 = scalar_select 0, %s7, %s5
  // Predicated region
  $region2: #{l1g_loss.1} parent=0 // pred_check
    _
  $region3: #{l1g_loss.1} parent=0 // pred_check_branch
    %10 = sbr.rel (0) target = $region5
  $region4: #{l1g_loss.1} parent=0 // pred_region
    %s11 = sadd.s32 0, 0
    %p12 = scmp.lt.s32.totalorder %s11, 0
    %s13 = scalar_select %p12, %s11, 0
    %s14 = smul.u32 2, %s13
    %p15 = scmp.lt.s32.totalorder %s14, 1
    %s16 = scalar_select %p15, %s14, 1
    %s17 = smul.addr %s16, 8
    %s18 = scalar_lea.vmem %s0, %s17
    %s19 = sadd.s32 0, 0
    %p20 = scmp.lt.s32.totalorder %s19, 0
    %s21 = scalar_select %p20, %s19, 0
    %s22 = smul.u32 2, %s21
  $region5: #{l1g_loss.1} parent=0 // pred_fallthru
    _
  // Predicated region
  $region6: #{l1g_loss.1} parent=0 // pred_check
    _
  $region7: #{l1g_loss.1} parent=0 // pred_check_branch
    %24 = sbr.rel (0) target = $region9
  $region8: #{l1g_loss.1} parent=0 // pred_region
    %s25 = sadd.s32 0, 0
    %p26 = scmp.lt.s32.totalorder %s25, 0
    %s27 = scalar_select %p26, %s25, 0
    %s28 = smul.u32 2, %s27
    %p29 = scmp.lt.s32.totalorder %s28, 1
    %s30 = scalar_select %p29, %s28, 1
    %s31 = smul.addr %s30, 8
    %s32 = scalar_lea.vmem %s1, %s31
    %s33 = sadd.s32 0, 0
    %p34 = scmp.lt.s32.totalorder %s33, 0
    %s35 = scalar_select %p34, %s33, 0
    %s36 = smul.u32 2, %s35
  $region9: #{l1g_loss.1} parent=0 // pred_fallthru
    _
  %s37 = sadd.s32 0, 0
  %p38 = scmp.lt.s32.totalorder %s37, 0
  %s39 = scalar_select %p38, %s37, 0
  %s40 = smul.u32 2, %s39
  %p41 = scmp.lt.s32.totalorder %s40, 1
  %s42 = scalar_select %p41, %s40, 1
  %s43 = smul.addr %s42, 8
  %s44 = scalar_lea.vmem %s0, %s43
  %s45 = sadd.s32 0, 0
  %p46 = scmp.lt.s32.totalorder %s45, 0
  %s47 = scalar_select %p46, %s45, 0
  %s48 = smul.u32 2, %s47
  %p49 = scmp.lt.s32.totalorder %s48, 1
  %s50 = scalar_select %p49, %s48, 1
  %s51 = smul.addr %s50, 8
  %s52 = scalar_lea.vmem %s1, %s51
  %s53 = sadd.s32 0, 0
  %p54 = scmp.lt.s32.totalorder %s53, 0
  %s55 = scalar_select %p54, %s53, 0
  %s56 = smul.u32 2, %s55
  %p57 = scmp.lt.s32.totalorder %s56, 1
  %s58 = scalar_select %p57, %s56, 1
  %s59 = smul.addr %s58, 8
  %s60 = scalar_lea.vmem %s0, %s59
  %s61 = sadd.s32 0, 0
  %p62 = scmp.lt.s32.totalorder %s61, 0
  %s63 = scalar_select %p62, %s61, 0
  %s64 = smul.u32 2, %s63
  %s65 = sadd.s32 0, 0
  %p66 = scmp.lt.s32.totalorder %s65, 0
  %s67 = scalar_select %p66, %s65, 0
  %s68 = smul.u32 2, %s67
  %p69 = scmp.lt.s32.totalorder %s68, 1
  %s70 = scalar_select %p69, %s68, 1
  %s71 = smul.addr %s70, 8
  %s72 = scalar_lea.vmem %s1, %s71
  %s73 = sadd.s32 0, 0
  %p74 = scmp.lt.s32.totalorder %s73, 0
  %s75 = scalar_select %p74, %s73, 0
  %s76 = smul.u32 2, %s75
  %p77 = scmp.eq.s32.totalorder 0, 0
  // Predicated region
  $region10: #{l1g_loss.1} parent=0 // pred_check
    %p78 = pneg %p77
  $region11: #{l1g_loss.1} parent=0 // pred_check_branch
    %80 = sbr.rel (%p78) target = $region13
  $region12: #{l1g_loss.1} parent=0 // pred_region
    %81 = vst [vmem:[%s2] sm:$0xff] 0.0
    %82 = vst [vmem:[%s3] sm:$0xff] 0.0
  $region13: #{l1g_loss.1} parent=0 // pred_fallthru
    _
  %v83 = vld [vmem:[%s60] sm:$0xff]
  %v84 = vld [vmem:[%s60 + $0x8] sm:$0xff]
  %v85 = vld [vmem:[%s72] sm:$0xff]
  %v86 = vld [vmem:[%s72 + $0x8] sm:$0xff]
  %v87 = vsub.f32 %v83, %v85
  %v88 = vsub.f32 %v84, %v86
  %v89 = vand.u32 2147483647, %v87
  %v90 = vand.u32 2147483647, %v88
  %v91 = vmul.f32 %v83, %v83
  %v92 = vmul.f32 %v84, %v84
  %v93 = vld [vmem:[%s2] sm:$0xff]
  %v94 = vadd.f32 %v89, %v90
  %v95 = vadd.f32 %v93, %v94
  %96 = vst [vmem:[%s2] sm:$0xff] %v95
  %v97 = vld [vmem:[%s3] sm:$0xff]
  %v98 = vadd.f32 %v91, %v92
  %v99 = vadd.f32 %v97, %v98
  %100 = vst [vmem:[%s3] sm:$0xff] %v99
  // Predicated region
  $region14: #{l1g_loss.1} parent=0 // pred_check
    _
  $region15: #{l1g_loss.1} parent=0 // pred_check_branch
    %102 = sbr.rel (0) target = $region17
  $region16: #{l1g_loss.1} parent=0 // pred_region
    _
  $region17: #{l1g_loss.1} parent=0 // pred_fallthru
    _
  // Predicated region
  $region18: #{l1g_loss.1} parent=0 // pred_check
    _
  $region19: #{l1g_loss.1} parent=0 // pred_check_branch
    %104 = sbr.rel (0) target = $region21
  $region20: #{l1g_loss.1} parent=0 // pred_region
    _
  $region21: #{l1g_loss.1} parent=0 // pred_fallthru
    _
  // Predicated region
  $region22: #{l1g_loss.1} parent=0 // pred_check
    _
  $region23: #{l1g_loss.1} parent=0 // pred_check_branch
    %106 = sbr.rel (0) target = $region25
  $region24: #{l1g_loss.1} parent=0 // pred_region
    _
  $region25: #{l1g_loss.1} parent=0 // pred_fallthru
    _
  // Predicated region
  $region26: #{l1g_loss.1} parent=0 // pred_check
    _
  $region27: #{l1g_loss.1} parent=0 // pred_check_branch
    %108 = sbr.rel (0) target = $region29
  $region28: #{l1g_loss.1} parent=0 // pred_region
    _
  $region29: #{l1g_loss.1} parent=0 // pred_fallthru
    _

</llo_original>
